<compile_context>
chip_gen: v6e
topology: v6e:2x2x1
jax: 0.10.0
libtpu: 0.0.40
codegen_flags: <defaults>
</compile_context>

<pallas_src>
import functools

import jax
import jax.numpy as jnp
from jax.experimental import pallas as pl
from jax.experimental.pallas import tpu as pltpu


# ----------------------------- kernels ---------------------------------------


def _eval_kernel(x_ref, w_ref, b_ref, out_ref):
    # [mu | logvar | style] = x @ [W1 | W2 | W1@W3] + [b1 | b2 | b1@W3+b3]
    out_ref[...] = (
        jnp.dot(x_ref[...], w_ref[...], preferred_element_type=jnp.float32)
        + b_ref[...]
    )


def _train_kernel(x_ref, eps_ref, w_ref, b_ref, w3_ref, out_ref, *, z_dim):
    # Main lane-dense matmul: h = [mu | logvar | mu@W3+b3]   (B, 2*z_dim+out_dim)
    h = (
        jnp.dot(x_ref[...], w_ref[...], preferred_element_type=jnp.float32)
        + b_ref[...]
    )
    mu = h[:, :z_dim]
    logvar = h[:, z_dim:2 * z_dim]
    style_mu = h[:, 2 * z_dim:]                 # = mu @ W3 + b3

    # Reparameterize (elementwise kept in f32 -- v5e has no bf16 VPU/EUP).
    std = jnp.exp(0.5 * logvar)
    delta = eps_ref[...] * std                  # eps * std, f32
    z = mu + delta

    # Small correction matmul: style = (mu + delta) @ W3 + b3
    style = style_mu + jnp.dot(
        delta.astype(w3_ref.dtype), w3_ref[...], preferred_element_type=jnp.float32
    )

    # Direct sub-slab stores into the packed output [mu | logvar | z | style]
    # (no lane-axis concatenate).
    out_ref[:, :2 * z_dim] = h[:, :2 * z_dim]
    out_ref[:, 2 * z_dim:3 * z_dim] = z
    out_ref[:, 3 * z_dim:] = style


# ----------------------------- param fusion (one-time) ------------------------


def fuse_params(params, compute_dtype=jnp.bfloat16):
    """Precompute fused weights ONCE (hoisted out of the forward hot path).

    Returns (w_fused, b_fused, w3_c):
      w_fused : (gru_units, 2*z_dim + out_dim) = [W1 | W2 | W1@W3], compute_dtype
      b_fused : (1, 2*z_dim + out_dim)         = [b1 | b2 | b1@W3+b3], f32
      w3_c    : (z_dim, out_dim)               = W3, compute_dtype (train correction)
    """
    w1, b1, w2, b2, w3, b3 = [jnp.asarray(p, jnp.float32) for p in params]
    hi = jax.lax.Precision.HIGHEST
    w13 = jnp.dot(w1, w3, precision=hi)           # fold fc_final through fc1
    b13 = jnp.dot(b1, w3, precision=hi) + b3
    w_fused = jnp.concatenate([w1, w2, w13], axis=1).astype(compute_dtype)
    b_fused = jnp.concatenate([b1, b2, b13], axis=1)          # stays f32
    return w_fused, b_fused, w3.astype(compute_dtype)


# ----------------------------- wrapper ----------------------------------------


def _auto_block_rows(batch, row_align):
    # >=512-row tiles amortize per-step overhead; >=2 steps so the "parallel"
    # grid axis feeds both v7x TensorCores and DMAs double-buffer.
    for cand in (2048, 1024, 512):
        if cand % row_align == 0 and 2 * cand <= batch and batch % cand == 0:
            return cand
    return None


def vae_style_token_layer(x, fused, *, training=False, rng_key=None, block_rows=None):
    """x: (B, gru_units) f32. `fused` from fuse_params. Returns (style, mu, logvar, z)."""
    w_fused, b_fused, w3_c = fused
    z_dim = w3_c.shape[0]
    out_dim = w3_c.shape[1]
    compute_dtype = w_fused.dtype
    B = x.shape[0]

    x_c = x.astype(compute_dtype)

    if training:
        if rng_key is None:
            raise ValueError("rng_key is required when training=True")
        eps = jax.random.normal(rng_key, (B, z_dim), jnp.float32)
        packed_dim = 3 * z_dim + out_dim
        kernel = functools.partial(_train_kernel, z_dim=z_dim)
        inputs = (x_c, eps, w_fused, b_fused, w3_c)
        row_tiled = (True, True, False, False, False)
    else:
        packed_dim = 2 * z_dim + out_dim
        kernel = _eval_kernel
        inputs = (x_c, w_fused, b_fused)
        row_tiled = (True, False, False)

    row_align = 16 if compute_dtype == jnp.bfloat16 else 8
    if block_rows is None:
        block_rows = _auto_block_rows(B, row_align)

    out_shape = jax.ShapeDtypeStruct((B, packed_dim), jnp.float32)

    if block_rows is None or block_rows >= B:
        # Grid-less: whole arrays resident in VMEM (tiny-B / launch-overhead regime).
        vmem = pl.BlockSpec(memory_space=pltpu.MemorySpace.VMEM)
        packed = pl.pallas_call(
            kernel,
            out_shape=out_shape,
            in_specs=[vmem] * len(inputs),
            out_specs=vmem,
        )(*inputs)
    else:
        if B % block_rows != 0 or block_rows % row_align != 0:
            raise ValueError(
                f"block_rows must divide B={B} and be a multiple of {row_align}")
        in_specs = []
        for arr, tiled in zip(inputs, row_tiled):
            if tiled:
                in_specs.append(
                    pl.BlockSpec((block_rows, arr.shape[1]), lambda i: (i, 0)))
            else:
                # Weights / biases: constant index_map -> resident across tiles.
                in_specs.append(pl.BlockSpec(arr.shape, lambda i: (0, 0)))
        out_specs = pl.BlockSpec((block_rows, packed_dim), lambda i: (i, 0))
        packed = pl.pallas_call(
            kernel,
            out_shape=out_shape,
            grid=(B // block_rows,),
            in_specs=in_specs,
            out_specs=out_specs,
            compiler_params=pltpu.CompilerParams(
                dimension_semantics=("parallel",)),
        )(*inputs)

    mu = packed[:, :z_dim]
    logvar = packed[:, z_dim:2 * z_dim]
    if training:
        z = packed[:, 2 * z_dim:3 * z_dim]
        style = packed[:, 3 * z_dim:]
    else:
        style = packed[:, 2 * z_dim:]
        z = mu   # eval-mode reparameterize returns mu
    return style, mu, logvar, z


# ----------------------------- params / reference -----------------------------


def init_params(key, gru_units=128, z_latent_dim=32):
    """PyTorch-style uniform(-1/sqrt(fan_in), 1/sqrt(fan_in)) init.

    Weights stored as (in_features, out_features) = torch weight.T,
    biases as (1, out_features).
    """
    output_dim = gru_units // 2
    ks = jax.random.split(key, 6)

    def _lin(kw, kb, fan_in, fan_out):
        bound = 1.0 / jnp.sqrt(jnp.float32(fan_in))
        w = jax.random.uniform(kw, (fan_in, fan_out), jnp.float32, -bound, bound)
        b = jax.random.uniform(kb, (1, fan_out), jnp.float32, -bound, bound)
        return w, b

    w1, b1 = _lin(ks[0], ks[1], gru_units, z_latent_dim)     # fc1
    w2, b2 = _lin(ks[2], ks[3], gru_units, z_latent_dim)     # fc2
    w3, b3 = _lin(ks[4], ks[5], z_latent_dim, output_dim)    # fc_final
    return (w1, b1, w2, b2, w3, b3)


def _reference_eval(x, params):
    w1, b1, w2, b2, w3, b3 = params
    mu = x @ w1 + b1
    logvar = x @ w2 + b2
    z = mu
    style = z @ w3 + b3
    return style, mu, logvar, z


def _reference_train(x, params, eps):
    w1, b1, w2, b2, w3, b3 = params
    mu = x @ w1 + b1
    logvar = x @ w2 + b2
    z = mu + eps * jnp.exp(0.5 * logvar)
    style = z @ w3 + b3
    return style, mu, logvar, z


def _check(got, ref, atol, rtol):
    for g, r in zip(got, ref):
        assert g.shape == r.shape, (g.shape, r.shape)
        assert jnp.allclose(g, r, atol=atol, rtol=rtol), float(
            jnp.max(jnp.abs(g - r)))


# ----------------------------- main --------------------------------------------


if __name__ == "__main__":
    gru_units = 128
    z_latent_dim = 32
    batch = 8

    key = jax.random.PRNGKey(0)
    k_x, k_p, k_eps, k_big = jax.random.split(key, 4)
    x = jax.random.normal(k_x, (batch, gru_units), jnp.float32)
    params = init_params(k_p, gru_units, z_latent_dim)

    # Fused weights are built ONCE (hoisted out of the forward hot path).
    fused_f32 = fuse_params(params, compute_dtype=jnp.float32)
    fused_bf16 = fuse_params(params, compute_dtype=jnp.bfloat16)

    # Jit the wrapper so the post-kernel packed-slab slices fuse into consumers.
    fwd = jax.jit(vae_style_token_layer, static_argnames=("training", "block_rows"))

    # ---- Eval mode, f32 compute (tight semantic check). ----
    style, mu, logvar, z = jax.block_until_ready(fwd(x, fused_f32, training=False))
    ref = _reference_eval(x, params)
    assert style.shape == (batch, gru_units // 2)
    assert mu.shape == (batch, z_latent_dim)
    assert logvar.shape == (batch, z_latent_dim)
    assert z.shape == (batch, z_latent_dim)
    _check((style, mu, logvar, z), ref, atol=5e-4, rtol=5e-4)

    # ---- Eval mode, bf16 compute (bandwidth-optimized path, looser tolerance). ----
    out_bf16 = jax.block_until_ready(fwd(x, fused_bf16, training=False))
    _check(out_bf16, ref, atol=3e-2, rtol=3e-2)

    # ---- Train mode, f32 compute (stochastic eps drawn from rng_key inside). ----
    out_t = jax.block_until_ready(fwd(x, fused_f32, training=True, rng_key=k_eps))
    eps = jax.random.normal(k_eps, (batch, z_latent_dim), jnp.float32)
    ref_t = _reference_train(x, params, eps)
    _check(out_t, ref_t, atol=5e-4, rtol=5e-4)

    # ---- Train mode, bf16 compute. ----
    out_t16 = jax.block_until_ready(fwd(x, fused_bf16, training=True, rng_key=k_eps))
    _check(out_t16, ref_t, atol=3e-2, rtol=3e-2)

    # ---- Large batch: auto-picked row-tiled grid path (>=2 steps, bf16). ----
    B_big = 1024
    x_big = jax.random.normal(k_big, (B_big, gru_units), jnp.float32)
    out_big = jax.block_until_ready(fwd(x_big, fused_bf16, training=False))
    ref_big = _reference_eval(x_big, params)
    _check(out_big, ref_big, atol=3e-2, rtol=3e-2)

    # ---- Large batch, explicit block_rows through the grid path, f32 compute. ----
    out_big32 = jax.block_until_ready(
        fwd(x_big, fused_f32, training=False, block_rows=256))
    _check(out_big32, ref_big, atol=5e-4, rtol=5e-4)

    print("KERNEL_OK")
</pallas_src>

<mosaic_0001>
module attributes {stable_mosaic.version = 11 : i64} {
  func.func @_eval_kernel(%arg0: memref<8x128xf32, #tpu.memory_space<vmem>>, %arg1: memref<128x128xf32, #tpu.memory_space<vmem>>, %arg2: memref<1x128xf32, #tpu.memory_space<vmem>>, %arg3: memref<8x128xf32, #tpu.memory_space<vmem>>) attributes {dimension_semantics = [], scalar_prefetch = 0 : i64, scratch_operands = 0 : i64, tpu.core_type = #tpu.core_type<tc>} {
    %c0 = arith.constant 0 : index
    %c0_0 = arith.constant 0 : index
    %0 = vector.load %arg0[%c0, %c0_0] : memref<8x128xf32, #tpu.memory_space<vmem>>, vector<8x128xf32>
    %c0_1 = arith.constant 0 : index
    %c0_2 = arith.constant 0 : index
    %1 = vector.load %arg1[%c0_1, %c0_2] : memref<128x128xf32, #tpu.memory_space<vmem>>, vector<128x128xf32>
    %cst = arith.constant dense<0.000000e+00> : vector<8x128xf32>
    %2 = tpu.matmul %0, %1, %cst {dimension_numbers = #tpu.dot_dimension_numbers<[1], [0], [0], [1], [0, 0, 1, 1], [], []>} : vector<8x128xf32>, vector<128x128xf32>, vector<8x128xf32> -> vector<8x128xf32>
    %c0_3 = arith.constant 0 : index
    %c0_4 = arith.constant 0 : index
    %3 = vector.load %arg2[%c0_3, %c0_4] : memref<1x128xf32, #tpu.memory_space<vmem>>, vector<1x128xf32>
    %4 = vector.broadcast %3 : vector<1x128xf32> to vector<8x128xf32>
    %5 = arith.addf %2, %4 : vector<8x128xf32>
    %c0_5 = arith.constant 0 : index
    %c0_6 = arith.constant 0 : index
    %6 = vector.load %arg3[%c0_5, %c0_6] : memref<8x128xf32, #tpu.memory_space<vmem>>, vector<8x128xf32>
    tpu.vector_store %arg3[%c0_5, %c0_6], %5 {strides = array<i32>} : memref<8x128xf32, #tpu.memory_space<vmem>>, vector<8x128xf32>,
    return
  }
}

</mosaic_0001>

<llo_original>
// kernel: vae_style_token_layer.1
$region0: #{vae_style_token_layer.1}
  #allocation0 [shape = 'u32[]', space=smem, size = 0x4, offset = 0x4, fixed_abs, tag = 'smem constant byte address 0x4 - core index']
  #allocation1 [shape = 'u32[144,128]{1,0:T(1,128)}', space=vmem, size = 0x12000, scoped, tag = 'internal scratch']
  %s0 = inlined_call_operand.hbm [shape: f32[8,128], index: 0, kind: input, shape index: {}]
  %s1 = inlined_call_operand.hbm [shape: f32[128,128], index: 1, kind: input, shape index: {}]
  %s2 = inlined_call_operand.vmem [shape: f32[1,128], index: 2, kind: input, shape index: {}]
  %s3 = inlined_call_operand.vmem [shape: f32[8,128], index: 3, kind: output, shape index: {}]
  %s4 = sld [smem:[#allocation0]]
  $region30: #{vae_style_token_layer.1} parent=0
    _
  %s6 = ssub.s32 1, %s4
  %s7 = scalar_select 0, %s6, %s4
  $region1: #{vae_style_token_layer.1} parent=0
    #allocation2 [shape = 'u8[4096]{0}', space=vmem, size = 0x1000, scoped, tag = 'input window, operand 0, single buffered']
    #allocation3 [shape = 's32[1]{0}', space=sflag, size = 0x4, scoped, tag = 'scoped memory for vae_style_token_layer.1']
    #allocation4 [shape = 'u8[65536]{0}', space=vmem, size = 0x10000, scoped, tag = 'input window, operand 1, single buffered']
    #allocation5 [shape = 's32[1]{0}', space=sflag, size = 0x4, scoped, tag = 'scoped memory for vae_style_token_layer.1']
    %8 = vsyncpa [#allocation3], 0
    %9 = vsyncpa [#allocation5], 0
    // Predicated region
    $region2: #{vae_style_token_layer.1} parent=1 // pred_check
      _
    $region3: #{vae_style_token_layer.1} parent=1 // pred_check_branch
      %11 = sbr.rel (0) target = $region5
    $region4: #{vae_style_token_layer.1} parent=1 // pred_region
      %s13 = ssub.s32 128, 128
      %14 = vsyncadd [#allocation3], %s13
      %s16 = sshll.u32 [#allocation2], 4
      %s17 = int_to_ptr.vmem [resolvable:$true] %s16
      %19 = dma.hbm_to_vmem [thread:$0]  %s0, 128, %s17, [#allocation3]
    $region5: #{vae_style_token_layer.1} parent=1 // pred_fallthru
      _
    // Predicated region
    $region6: #{vae_style_token_layer.1} parent=1 // pred_check
      _
    $region7: #{vae_style_token_layer.1} parent=1 // pred_check_branch
      %21 = sbr.rel (0) target = $region9
    $region8: #{vae_style_token_layer.1} parent=1 // pred_region
      %s23 = ssub.s32 2048, 2048
      %24 = vsyncadd [#allocation5], %s23
      %s25 = sshll.u32 [#allocation4], 4
      %s26 = int_to_ptr.vmem [resolvable:$true] %s25
      %31 = dma.hbm_to_vmem [thread:$0]  %s1, 2048, %s26, [#allocation5], 128, 128, 8
    $region9: #{vae_style_token_layer.1} parent=1 // pred_fallthru
      _
    // Predicated region
    $region10: #{vae_style_token_layer.1} parent=1 // pred_check
      _
    $region11: #{vae_style_token_layer.1} parent=1 // pred_check_branch
      %33 = sbr.rel (0) target = $region13
    $region12: #{vae_style_token_layer.1} parent=1 // pred_region
      _
    $region13: #{vae_style_token_layer.1} parent=1 // pred_fallthru
      _
    // Predicated region
    $region14: #{vae_style_token_layer.1} parent=1 // pred_check
      _
    $region15: #{vae_style_token_layer.1} parent=1 // pred_check_branch
      %35 = sbr.rel (0) target = $region17
    $region16: #{vae_style_token_layer.1} parent=1 // pred_region
      %36 = dma.done [#allocation3], 128
    $region17: #{vae_style_token_layer.1} parent=1 // pred_fallthru
      _
    // Predicated region
    $region18: #{vae_style_token_layer.1} parent=1 // pred_check
      _
    $region19: #{vae_style_token_layer.1} parent=1 // pred_check_branch
      %38 = sbr.rel (0) target = $region21
    $region20: #{vae_style_token_layer.1} parent=1 // pred_region
      %39 = dma.done [#allocation5], 2048
    $region21: #{vae_style_token_layer.1} parent=1 // pred_fallthru
      _
    %v40 = vld [vmem:[#allocation2] sm:$0xff]
    %v41 = vld [vmem:[#allocation4] sm:$0xff]
    %v42 = vld [vmem:[#allocation4 + $0x8] sm:$0xff]
    %v43 = vld [vmem:[#allocation4 + $0x10] sm:$0xff]
    %v44 = vld [vmem:[#allocation4 + $0x18] sm:$0xff]
    %v45 = vld [vmem:[#allocation4 + $0x20] sm:$0xff]
    %v46 = vld [vmem:[#allocation4 + $0x28] sm:$0xff]
    %v47 = vld [vmem:[#allocation4 + $0x30] sm:$0xff]
    %v48 = vld [vmem:[#allocation4 + $0x38] sm:$0xff]
    %v49 = vld [vmem:[#allocation4 + $0x40] sm:$0xff]
    %v50 = vld [vmem:[#allocation4 + $0x48] sm:$0xff]
    %v51 = vld [vmem:[#allocation4 + $0x50] sm:$0xff]
    %v52 = vld [vmem:[#allocation4 + $0x58] sm:$0xff]
    %v53 = vld [vmem:[#allocation4 + $0x60] sm:$0xff]
    %v54 = vld [vmem:[#allocation4 + $0x68] sm:$0xff]
    %v55 = vld [vmem:[#allocation4 + $0x70] sm:$0xff]
    %v56 = vld [vmem:[#allocation4 + $0x78] sm:$0xff]
    %v57 = vld [vmem:[%s2] sm:$0x1]
    %v59 = vlaneseq
    %v60 = vshrl.u32 %v59, 7
    %v61 = vsub.s32 0, %v60
    %v62 = vrot.slane %v57, %v61
    %64 = vmatprep.subr.mxu0 0.0
    %65 = vmatpush1.msra.mxu0 %v56
    %66 = vmatprep.subr.mxu0 0.0
    %67 = vmatpush1.msra.mxu0 %v55
    %68 = vmatprep.subr.mxu0 0.0
    %69 = vmatpush1.msra.mxu0 %v54
    %70 = vmatprep.subr.mxu0 0.0
    %71 = vmatpush1.msra.mxu0 %v53
    %72 = vmatprep.subr.mxu0 0.0
    %73 = vmatpush1.msra.mxu0 %v52
    %74 = vmatprep.subr.mxu0 0.0
    %75 = vmatpush1.msra.mxu0 %v51
    %76 = vmatprep.subr.mxu0 0.0
    %77 = vmatpush1.msra.mxu0 %v50
    %78 = vmatprep.subr.mxu0 0.0
    %79 = vmatpush1.msra.mxu0 %v49
    %80 = vmatprep.subr.mxu0 0.0
    %81 = vmatpush1.msra.mxu0 %v48
    %82 = vmatprep.subr.mxu0 0.0
    %83 = vmatpush1.msra.mxu0 %v47
    %84 = vmatprep.subr.mxu0 0.0
    %85 = vmatpush1.msra.mxu0 %v46
    %86 = vmatprep.subr.mxu0 0.0
    %87 = vmatpush1.msra.mxu0 %v45
    %88 = vmatprep.subr.mxu0 0.0
    %89 = vmatpush1.msra.mxu0 %v44
    %90 = vmatprep.subr.mxu0 0.0
    %91 = vmatpush1.msra.mxu0 %v43
    %92 = vmatprep.subr.mxu0 0.0
    %93 = vmatpush1.msra.mxu0 %v42
    %94 = vmatprep.subr.mxu0 0.0
    %95 = vmatpush1.msra.mxu0 %v41
    %96 = vmatprep.subr.mxu0 0.0
    %97 = vmatpush2.msra.mxu0 0.0
    %98 = vmatprep.subr.mxu0 0.0
    %99 = vmatpush2.msra.mxu0 0.0
    %100 = vmatprep.subr.mxu0 0.0
    %101 = vmatpush2.msra.mxu0 0.0
    %102 = vmatprep.subr.mxu0 0.0
    %103 = vmatpush2.msra.mxu0 0.0
    %104 = vmatprep.subr.mxu0 0.0
    %105 = vmatpush2.msra.mxu0 0.0
    %106 = vmatprep.subr.mxu0 0.0
    %107 = vmatpush2.msra.mxu0 0.0
    %108 = vmatprep.subr.mxu0 0.0
    %109 = vmatpush2.msra.mxu0 0.0
    %110 = vmatprep.subr.mxu0 0.0
    %111 = vmatpush2.msra.mxu0 0.0
    %112 = vmatprep.subr.mxu0 0.0
    %113 = vmatpush2.msra.mxu0 0.0
    %114 = vmatprep.subr.mxu0 0.0
    %115 = vmatpush2.msra.mxu0 0.0
    %116 = vmatprep.subr.mxu0 0.0
    %117 = vmatpush2.msra.mxu0 0.0
    %118 = vmatprep.subr.mxu0 0.0
    %119 = vmatpush2.msra.mxu0 0.0
    %120 = vmatprep.subr.mxu0 0.0
    %121 = vmatpush2.msra.mxu0 0.0
    %122 = vmatprep.subr.mxu0 0.0
    %123 = vmatpush2.msra.mxu0 0.0
    %124 = vmatprep.subr.mxu0 0.0
    %125 = vmatpush2.msra.mxu0 0.0
    %126 = vmatprep.subr.mxu0 0.0
    %127 = vmatpush2.msra.mxu0 0.0
    %128 = vmatprep.mubr.f32.mxu0 0.0
    %129 = vmatmul.mubr.f32.gmra.mxu0 %v40
    %v130 = vpop.f32.mrf.mxu0
    %v131 = vadd.f32 %v62, %v130
    %v132 = vpop.f32.mrf.mxu0
    %133 = vdwg.mxu0
    %134 = vst [vmem:[%s3] sm:$0xff] %v131
    // Predicated region
    $region22: #{vae_style_token_layer.1} parent=1 // pred_check
      _
    $region23: #{vae_style_token_layer.1} parent=1 // pred_check_branch
      %136 = sbr.rel (0) target = $region25
    $region24: #{vae_style_token_layer.1} parent=1 // pred_region
      _
    $region25: #{vae_style_token_layer.1} parent=1 // pred_fallthru
      _
    // Predicated region
    $region26: #{vae_style_token_layer.1} parent=1 // pred_check
      _
    $region27: #{vae_style_token_layer.1} parent=1 // pred_check_branch
      %138 = sbr.rel (0) target = $region29
    $region28: #{vae_style_token_layer.1} parent=1 // pred_region
      _
    $region29: #{vae_style_token_layer.1} parent=1 // pred_fallthru
      _
    %139 = vsyncpa [#allocation3], 1
    %140 = vsyncpa [#allocation5], 1

</llo_original>
